<compile_context>
chip_gen: v7x
topology: tpu7x:2x2x1
jax: 0.10.0
libtpu: 0.0.40
codegen_flags: <defaults>
</compile_context>

<pallas_src>
import functools

import jax
import jax.numpy as jnp
from jax.experimental import pallas as pl
from jax.experimental.pallas import tpu as pltpu


def _recip(x):
    # EUP approximate reciprocal + one Newton-Raphson refinement step
    # r' = r * (2 - x*r): error ~eps^2 of the hw approximation, so the result
    # matches an exact divide to well below 1e-5 while keeping the divides in
    # the (otherwise idle) EUP issue slot.
    r = pl.reciprocal(x, approx=True)
    return r * (2.0 - x * r)


def _giou_math(pred_ref, tgt_ref):
    # pred_ref / tgt_ref are (4, TILE_M, 128); upcast once per block so bf16
    # inputs are supported and all math runs in f32.
    p = pred_ref[...].astype(jnp.float32)
    t = tgt_ref[...].astype(jnp.float32)
    p_l, p_t, p_r, p_b = p[0], p[1], p[2], p[3]
    t_l, t_t, t_r, t_b = t[0], t[1], t[2], t[3]

    target_area = (t_l + t_r) * (t_t + t_b)
    pred_area = (p_l + p_r) * (p_t + p_b)

    w_intersect = jnp.minimum(p_l, t_l) + jnp.minimum(p_r, t_r)
    g_w_intersect = jnp.maximum(p_l, t_l) + jnp.maximum(p_r, t_r)
    h_intersect = jnp.minimum(p_b, t_b) + jnp.minimum(p_t, t_t)
    g_h_intersect = jnp.maximum(p_b, t_b) + jnp.maximum(p_t, t_t)

    ac_union = g_w_intersect * g_h_intersect + 1e-07
    area_intersect = w_intersect * h_intersect
    area_union = target_area + pred_area - area_intersect + 1e-07

    ious = area_intersect * _recip(area_union)
    # losses = 1 - gious = 1 - ious + (ac_union - area_union) / ac_union
    losses = (1.0 - ious) + (ac_union - area_union) * _recip(ac_union)
    return ious, losses


def _giou_kernel_mean(pred_ref, tgt_ref, ious_ref, partial_ref,
                      *, n_valid: int, tile_m: int):
    i = pl.program_id(0)
    ious, losses = _giou_math(pred_ref, tgt_ref)
    ious_ref[...] = ious

    def to_slab(x):
        # (TILE_M, 128) -> (8, 128): vreg-group reshape + vreg-wise adds,
        # giving a sublane-aligned, unmasked partial-sum store.
        return jnp.sum(x.reshape(tile_m // 8, 8, 128), axis=0)

    is_last = i == pl.num_programs(0) - 1

    # Non-last blocks are fully valid: no mask work.
    @pl.when(jnp.logical_not(is_last))
    def _():
        partial_ref[0] = to_slab(losses)

    # Only the last block can contain padded lanes.
    @pl.when(is_last)
    def _():
        row = jax.lax.broadcasted_iota(jnp.int32, (tile_m, 128), 0) + i * tile_m
        col = jax.lax.broadcasted_iota(jnp.int32, (tile_m, 128), 1)
        full_rows = n_valid // 128
        rem = n_valid % 128
        valid = (row < full_rows) | ((row == full_rows) & (col < rem))
        partial_ref[0] = to_slab(jnp.where(valid, losses, 0.0))


def _giou_kernel_none(pred_ref, tgt_ref, ious_ref, losses_ref):
    ious, losses = _giou_math(pred_ref, tgt_ref)
    ious_ref[...] = ious
    losses_ref[...] = losses


@functools.partial(jax.jit,
                   static_argnames=("reduction", "tile_rows", "return_padded"))
def _giou_loss_impl(pred, target, *, reduction, tile_rows, return_padded):
    if pred.ndim == 4:
        pred = pred[None]
        target = target[None]
    S, B, C, H, W = pred.shape
    assert C == 4
    n = S * B * H * W

    # Lane-dense layout: N -> (m, 128) rows of 128 lanes.
    m = pl.cdiv(n, 128)
    # Sublane-aligned tile rows; keep >= 2 blocks whenever m > 8 so the
    # "parallel" grid axis can shard across v7x's two TensorCores.
    tm = min(tile_rows, max(8, pl.cdiv(pl.cdiv(m, 2), 8) * 8))
    tm = max(8, (tm // 8) * 8)
    m_pad = pl.cdiv(m, tm) * tm
    n_pad = m_pad * 128
    n_blocks = m_pad // tm

    def to_coord_major(x):
        # (S,B,4,H,W) -> (4, N) -> pad -> (4, m_pad, 128).  Under the
        # surrounding jit this fuses into a single read+write copy; dtype is
        # preserved (upcast to f32 happens inside the kernel).
        x = jnp.transpose(x, (2, 0, 1, 3, 4)).reshape(4, n)
        x = jnp.pad(x, ((0, 0), (0, n_pad - n)))
        return x.reshape(4, m_pad, 128)

    p3 = to_coord_major(pred)
    t3 = to_coord_major(target)

    in_specs = [
        pl.BlockSpec((4, tm, 128), lambda i: (0, i, 0)),
        pl.BlockSpec((4, tm, 128), lambda i: (0, i, 0)),
    ]

    # Explicit VMEM budget: double-buffered inputs + outputs, with headroom.
    # Portable across v5e (16 MiB default scoped), v6e/v7x (32 MiB default);
    # capped at 48 MiB to stay well under v7x's 64 MiB physical VMEM.
    itemsize = jnp.dtype(pred.dtype).itemsize
    block_in_bytes = 2 * 4 * tm * 128 * itemsize
    block_out_bytes = tm * 128 * 4 * (2 if reduction == 'none' else 1) + 8 * 128 * 4
    vmem_limit = int(2.5 * (block_in_bytes + block_out_bytes))
    vmem_limit = min(48 * 1024 * 1024, max(32 * 1024 * 1024, vmem_limit))
    cparams = pltpu.CompilerParams(
        dimension_semantics=("parallel",),
        vmem_limit_bytes=vmem_limit,
    )

    if reduction == 'mean':
        kernel = functools.partial(_giou_kernel_mean, n_valid=n, tile_m=tm)
        ious_pad, partials = pl.pallas_call(
            kernel,
            out_shape=(
                jax.ShapeDtypeStruct((m_pad, 128), jnp.float32),       # ious
                jax.ShapeDtypeStruct((n_blocks, 8, 128), jnp.float32),  # partial sums
            ),
            grid_spec=pltpu.PrefetchScalarGridSpec(
                num_scalar_prefetch=0,
                grid=(n_blocks,),
                in_specs=in_specs,
                out_specs=[
                    pl.BlockSpec((tm, 128), lambda i: (i, 0)),
                    pl.BlockSpec((1, 8, 128), lambda i: (i, 0, 0)),
                ],
            ),
            compiler_params=cparams,
        )(p3, t3)
        ious = ious_pad.reshape(-1)
        if not return_padded:
            ious = ious[:n]
        loss_mean = jnp.sum(partials) / jnp.float32(n)
        return loss_mean, ious

    elif reduction == 'none':
        ious_pad, losses_pad = pl.pallas_call(
            _giou_kernel_none,
            out_shape=(
                jax.ShapeDtypeStruct((m_pad, 128), jnp.float32),   # ious
                jax.ShapeDtypeStruct((m_pad, 128), jnp.float32),   # losses
            ),
            grid_spec=pltpu.PrefetchScalarGridSpec(
                num_scalar_prefetch=0,
                grid=(n_blocks,),
                in_specs=in_specs,
                out_specs=[
                    pl.BlockSpec((tm, 128), lambda i: (i, 0)),
                    pl.BlockSpec((tm, 128), lambda i: (i, 0)),
                ],
            ),
            compiler_params=cparams,
        )(p3, t3)
        ious = ious_pad.reshape(-1)
        if not return_padded:
            ious = ious[:n]
        # TODO(synk): emit per-batch partial sums in-kernel (batch-segmented
        # reduction) so the full losses array never hits HBM; currently the
        # per-b mean is a single fused read of losses_pad under this jit.
        losses = losses_pad.reshape(-1)[:n].reshape(S, B, H, W)
        loss_none = losses.mean(axis=(0, 2, 3))
        return loss_none, ious

    else:
        raise ValueError(f"unknown reduction: {reduction}")


def giou_loss_forward(pred, target, weights=None, reduction='mean',
                      tile_rows=2048, return_padded=False):
    """Matches GIoULoss.forward for weights=None (reduction 'mean' or 'none')."""
    # TODO(synk): weights path (boolean-indexed ious / masked mean) produces
    # dynamically-shaped outputs in the reference; not implemented here.
    if weights is not None:
        raise NotImplementedError("weights path not implemented")
    return _giou_loss_impl(pred, target, reduction=reduction,
                           tile_rows=tile_rows, return_padded=return_padded)


def _giou_reference(pred, target, reduction='mean'):
    """Pure-JAX reference mirroring the PyTorch forward (weights=None)."""
    if pred.ndim == 4:
        pred = pred[None]
        target = target[None]
    raw_shape = (pred.shape[0], pred.shape[1], pred.shape[3], pred.shape[4])
    p = jnp.transpose(pred, (0, 1, 3, 4, 2)).reshape(-1, 4).astype(jnp.float32)
    t = jnp.transpose(target, (0, 1, 3, 4, 2)).reshape(-1, 4).astype(jnp.float32)
    pl_, pt_, pr_, pb_ = p[:, 0], p[:, 1], p[:, 2], p[:, 3]
    tl_, tt_, tr_, tb_ = t[:, 0], t[:, 1], t[:, 2], t[:, 3]
    target_area = (tl_ + tr_) * (tt_ + tb_)
    pred_area = (pl_ + pr_) * (pt_ + pb_)
    w_intersect = jnp.minimum(pl_, tl_) + jnp.minimum(pr_, tr_)
    g_w_intersect = jnp.maximum(pl_, tl_) + jnp.maximum(pr_, tr_)
    h_intersect = jnp.minimum(pb_, tb_) + jnp.minimum(pt_, tt_)
    g_h_intersect = jnp.maximum(pb_, tb_) + jnp.maximum(pt_, tt_)
    ac_union = g_w_intersect * g_h_intersect + 1e-07
    area_intersect = w_intersect * h_intersect
    area_union = target_area + pred_area - area_intersect + 1e-07
    ious = area_intersect / area_union
    gious = ious - (ac_union - area_union) / ac_union
    losses = 1 - gious
    if reduction == 'mean':
        loss_mean = losses.mean()
    else:
        loss_mean = losses.reshape(raw_shape).mean(axis=(0, 2, 3))
    return loss_mean, ious


if __name__ == "__main__":
    key = jax.random.PRNGKey(0)
    k1, k2 = jax.random.split(key)
    # pred/target as (B, 4, H, W) LTRB distances (positive), B=2, H=W=16.
    pred = jax.random.uniform(k1, (2, 4, 16, 16), jnp.float32, 0.1, 2.0)
    target = jax.random.uniform(k2, (2, 4, 16, 16), jnp.float32, 0.1, 2.0)

    loss_mean, ious = giou_loss_forward(pred, target, reduction='mean')
    jax.block_until_ready((loss_mean, ious))

    ref_mean, ref_ious = _giou_reference(pred, target, reduction='mean')
    # Tolerance 1e-4: EUP approx reciprocal + one Newton step is ~1e-7
    # relative, so this passes with large margin.
    assert jnp.allclose(loss_mean, ref_mean, atol=1e-4, rtol=1e-4)
    assert jnp.allclose(ious, ref_ious, atol=1e-4, rtol=1e-4)

    loss_none, ious2 = giou_loss_forward(pred, target, reduction='none')
    jax.block_until_ready((loss_none, ious2))
    ref_none, _ = _giou_reference(pred, target, reduction='none')
    assert jnp.allclose(loss_none, ref_none, atol=1e-4, rtol=1e-4)
    assert jnp.allclose(ious2, ref_ious, atol=1e-4, rtol=1e-4)

    print("KERNEL_OK")
</pallas_src>

<mosaic_0001>
module attributes {stable_mosaic.version = 11 : i64} {
  func.func @_giou_kernel_mean(%arg0: i32, %arg1: memref<4x8x128xf32, #tpu.memory_space<vmem>>, %arg2: memref<4x8x128xf32, #tpu.memory_space<vmem>>, %arg3: memref<8x128xf32, #tpu.memory_space<vmem>>, %arg4: memref<1x8x128xf32, #tpu.memory_space<vmem>>) attributes {dimension_semantics = [#tpu.dimension_semantics<parallel>], iteration_bounds = array<i64: 1>, scalar_prefetch = 0 : i64, scratch_operands = 0 : i64, tpu.core_type = #tpu.core_type<tc>, window_params = [{transform_indices = @transform_0, window_bounds = array<i64: 4, 8, 128>}, {transform_indices = @transform_1, window_bounds = array<i64: 4, 8, 128>}, {transform_indices = @transform_2, window_bounds = array<i64: 8, 128>}, {transform_indices = @transform_3, window_bounds = array<i64: 1, 8, 128>}]} {
    %c0 = arith.constant 0 : index
    %c0_0 = arith.constant 0 : index
    %c0_1 = arith.constant 0 : index
    %0 = vector.load %arg1[%c0, %c0_0, %c0_1] : memref<4x8x128xf32, #tpu.memory_space<vmem>>, vector<4x8x128xf32>
    %c0_2 = arith.constant 0 : index
    %c0_3 = arith.constant 0 : index
    %c0_4 = arith.constant 0 : index
    %1 = vector.load %arg2[%c0_2, %c0_3, %c0_4] : memref<4x8x128xf32, #tpu.memory_space<vmem>>, vector<4x8x128xf32>
    %2 = vector.extract_strided_slice %0 {offsets = [0, 0, 0], sizes = [1, 8, 128], strides = [1, 1, 1]} : vector<4x8x128xf32> to vector<1x8x128xf32>
    %3 = vector.shape_cast %2 : vector<1x8x128xf32> to vector<8x128xf32>
    %4 = vector.extract_strided_slice %0 {offsets = [1, 0, 0], sizes = [1, 8, 128], strides = [1, 1, 1]} : vector<4x8x128xf32> to vector<1x8x128xf32>
    %5 = vector.shape_cast %4 : vector<1x8x128xf32> to vector<8x128xf32>
    %6 = vector.extract_strided_slice %0 {offsets = [2, 0, 0], sizes = [1, 8, 128], strides = [1, 1, 1]} : vector<4x8x128xf32> to vector<1x8x128xf32>
    %7 = vector.shape_cast %6 : vector<1x8x128xf32> to vector<8x128xf32>
    %8 = vector.extract_strided_slice %0 {offsets = [3, 0, 0], sizes = [1, 8, 128], strides = [1, 1, 1]} : vector<4x8x128xf32> to vector<1x8x128xf32>
    %9 = vector.shape_cast %8 : vector<1x8x128xf32> to vector<8x128xf32>
    %10 = vector.extract_strided_slice %1 {offsets = [0, 0, 0], sizes = [1, 8, 128], strides = [1, 1, 1]} : vector<4x8x128xf32> to vector<1x8x128xf32>
    %11 = vector.shape_cast %10 : vector<1x8x128xf32> to vector<8x128xf32>
    %12 = vector.extract_strided_slice %1 {offsets = [1, 0, 0], sizes = [1, 8, 128], strides = [1, 1, 1]} : vector<4x8x128xf32> to vector<1x8x128xf32>
    %13 = vector.shape_cast %12 : vector<1x8x128xf32> to vector<8x128xf32>
    %14 = vector.extract_strided_slice %1 {offsets = [2, 0, 0], sizes = [1, 8, 128], strides = [1, 1, 1]} : vector<4x8x128xf32> to vector<1x8x128xf32>
    %15 = vector.shape_cast %14 : vector<1x8x128xf32> to vector<8x128xf32>
    %16 = vector.extract_strided_slice %1 {offsets = [3, 0, 0], sizes = [1, 8, 128], strides = [1, 1, 1]} : vector<4x8x128xf32> to vector<1x8x128xf32>
    %17 = vector.shape_cast %16 : vector<1x8x128xf32> to vector<8x128xf32>
    %18 = arith.addf %11, %15 : vector<8x128xf32>
    %19 = arith.addf %13, %17 : vector<8x128xf32>
    %20 = arith.mulf %18, %19 : vector<8x128xf32>
    %21 = arith.addf %3, %7 : vector<8x128xf32>
    %22 = arith.addf %5, %9 : vector<8x128xf32>
    %23 = arith.mulf %21, %22 : vector<8x128xf32>
    %24 = arith.minimumf %3, %11 : vector<8x128xf32>
    %25 = arith.minimumf %7, %15 : vector<8x128xf32>
    %26 = arith.addf %24, %25 : vector<8x128xf32>
    %27 = arith.maximumf %3, %11 : vector<8x128xf32>
    %28 = arith.maximumf %7, %15 : vector<8x128xf32>
    %29 = arith.addf %27, %28 : vector<8x128xf32>
    %30 = arith.minimumf %9, %17 : vector<8x128xf32>
    %31 = arith.minimumf %5, %13 : vector<8x128xf32>
    %32 = arith.addf %30, %31 : vector<8x128xf32>
    %33 = arith.maximumf %9, %17 : vector<8x128xf32>
    %34 = arith.maximumf %5, %13 : vector<8x128xf32>
    %35 = arith.addf %33, %34 : vector<8x128xf32>
    %36 = arith.mulf %29, %35 : vector<8x128xf32>
    %cst = arith.constant 1.000000e-07 : f32
    %37 = vector.broadcast %cst : f32 to vector<8x128xf32>
    %38 = arith.addf %36, %37 : vector<8x128xf32>
    %39 = arith.mulf %26, %32 : vector<8x128xf32>
    %40 = arith.addf %20, %23 : vector<8x128xf32>
    %41 = arith.subf %40, %39 : vector<8x128xf32>
    %cst_5 = arith.constant 1.000000e-07 : f32
    %42 = vector.broadcast %cst_5 : f32 to vector<8x128xf32>
    %43 = arith.addf %41, %42 : vector<8x128xf32>
    %44 = tpu.reciprocal %43 {approx = true} : vector<8x128xf32> -> vector<8x128xf32>
    %45 = arith.mulf %43, %44 : vector<8x128xf32>
    %cst_6 = arith.constant 2.000000e+00 : f32
    %46 = vector.broadcast %cst_6 : f32 to vector<8x128xf32>
    %47 = arith.subf %46, %45 : vector<8x128xf32>
    %48 = arith.mulf %44, %47 : vector<8x128xf32>
    %49 = arith.mulf %39, %48 : vector<8x128xf32>
    %cst_7 = arith.constant 1.000000e+00 : f32
    %50 = vector.broadcast %cst_7 : f32 to vector<8x128xf32>
    %51 = arith.subf %50, %49 : vector<8x128xf32>
    %52 = arith.subf %38, %43 : vector<8x128xf32>
    %53 = tpu.reciprocal %38 {approx = true} : vector<8x128xf32> -> vector<8x128xf32>
    %54 = arith.mulf %38, %53 : vector<8x128xf32>
    %cst_8 = arith.constant 2.000000e+00 : f32
    %55 = vector.broadcast %cst_8 : f32 to vector<8x128xf32>
    %56 = arith.subf %55, %54 : vector<8x128xf32>
    %57 = arith.mulf %53, %56 : vector<8x128xf32>
    %58 = arith.mulf %52, %57 : vector<8x128xf32>
    %59 = arith.addf %51, %58 : vector<8x128xf32>
    %c0_9 = arith.constant 0 : index
    %c0_10 = arith.constant 0 : index
    %60 = vector.load %arg3[%c0_9, %c0_10] : memref<8x128xf32, #tpu.memory_space<vmem>>, vector<8x128xf32>
    tpu.vector_store %arg3[%c0_9, %c0_10], %49 {strides = array<i32>} : memref<8x128xf32, #tpu.memory_space<vmem>>, vector<8x128xf32>,
    %c0_i32 = arith.constant 0 : i32
    %61 = arith.cmpi eq, %arg0, %c0_i32 : i32
    %true = arith.constant true
    %62 = arith.xori %61, %true : i1
    %63 = arith.extui %62 : i1 to i32
    %c0_i32_11 = arith.constant 0 : i32
    %64 = arith.cmpi ne, %63, %c0_i32_11 : i32
    scf.if %64 {
      %67 = vector.shape_cast %59 : vector<8x128xf32> to vector<1x8x128xf32>
      %cst_13 = arith.constant dense<0.000000e+00> : vector<8x128xf32>
      %68 = vector.multi_reduction <add>, %67, %cst_13 [0] : vector<1x8x128xf32> to vector<8x128xf32>
      %c0_14 = arith.constant 0 : index
      %c0_15 = arith.constant 0 : index
      %c0_16 = arith.constant 0 : index
      %69 = vector.load %arg4[%c0_14, %c0_15, %c0_16] : memref<1x8x128xf32, #tpu.memory_space<vmem>>, vector<1x8x128xf32>
      %70 = vector.shape_cast %69 : vector<1x8x128xf32> to vector<8x128xf32>
      %71 = vector.shape_cast %68 : vector<8x128xf32> to vector<1x8x128xf32>
      tpu.vector_store %arg4[%c0_14, %c0_15, %c0_16], %71 {strides = array<i32>} : memref<1x8x128xf32, #tpu.memory_space<vmem>>, vector<1x8x128xf32>,
    } else {
    }
    %65 = arith.extui %61 : i1 to i32
    %c0_i32_12 = arith.constant 0 : i32
    %66 = arith.cmpi ne, %65, %c0_i32_12 : i32
    scf.if %66 {
      %67 = tpu.iota {dimensions = array<i32: 0>} : vector<8x128xi32>
      %c8_i32 = arith.constant 8 : i32
      %68 = arith.muli %arg0, %c8_i32 : i32
      %69 = vector.broadcast %68 : i32 to vector<8x128xi32>
      %70 = arith.addi %67, %69 : vector<8x128xi32>
      %71 = tpu.iota {dimensions = array<i32: 1>} : vector<8x128xi32>
      %c4_i32 = arith.constant 4 : i32
      %72 = vector.broadcast %c4_i32 : i32 to vector<8x128xi32>
      %73 = arith.cmpi slt, %70, %72 : vector<8x128xi32>
      %c4_i32_13 = arith.constant 4 : i32
      %74 = vector.broadcast %c4_i32_13 : i32 to vector<8x128xi32>
      %75 = arith.cmpi eq, %70, %74 : vector<8x128xi32>
      %c0_i32_14 = arith.constant 0 : i32
      %76 = vector.broadcast %c0_i32_14 : i32 to vector<8x128xi32>
      %77 = arith.cmpi slt, %71, %76 : vector<8x128xi32>
      %78 = arith.andi %75, %77 : vector<8x128xi1>
      %79 = arith.ori %73, %78 : vector<8x128xi1>
      %cst_15 = arith.constant 0.000000e+00 : f32
      %80 = vector.broadcast %cst_15 : f32 to vector<8x128xf32>
      %81 = arith.select %79, %59, %80 : vector<8x128xi1>, vector<8x128xf32>
      %82 = vector.shape_cast %81 : vector<8x128xf32> to vector<1x8x128xf32>
      %cst_16 = arith.constant dense<0.000000e+00> : vector<8x128xf32>
      %83 = vector.multi_reduction <add>, %82, %cst_16 [0] : vector<1x8x128xf32> to vector<8x128xf32>
      %c0_17 = arith.constant 0 : index
      %c0_18 = arith.constant 0 : index
      %c0_19 = arith.constant 0 : index
      %84 = vector.load %arg4[%c0_17, %c0_18, %c0_19] : memref<1x8x128xf32, #tpu.memory_space<vmem>>, vector<1x8x128xf32>
      %85 = vector.shape_cast %84 : vector<1x8x128xf32> to vector<8x128xf32>
      %86 = vector.shape_cast %83 : vector<8x128xf32> to vector<1x8x128xf32>
      tpu.vector_store %arg4[%c0_17, %c0_18, %c0_19], %86 {strides = array<i32>} : memref<1x8x128xf32, #tpu.memory_space<vmem>>, vector<1x8x128xf32>,
    } else {
    }
    return
  }
  func.func @transform_0(%arg0: i32) -> (i32, i32, i32) {
    %c0_i32 = arith.constant 0 : i32
    %c0_i32_0 = arith.constant 0 : i32
    %c0_i32_1 = arith.constant 0 : i32
    return %c0_i32, %arg0, %c0_i32_0 : i32, i32, i32
  }
  func.func @transform_1(%arg0: i32) -> (i32, i32, i32) {
    %c0_i32 = arith.constant 0 : i32
    %c0_i32_0 = arith.constant 0 : i32
    %c0_i32_1 = arith.constant 0 : i32
    return %c0_i32, %arg0, %c0_i32_0 : i32, i32, i32
  }
  func.func @transform_2(%arg0: i32) -> (i32, i32) {
    %c0_i32 = arith.constant 0 : i32
    %c0_i32_0 = arith.constant 0 : i32
    return %arg0, %c0_i32 : i32, i32
  }
  func.func @transform_3(%arg0: i32) -> (i32, i32, i32) {
    %c0_i32 = arith.constant 0 : i32
    %c0_i32_0 = arith.constant 0 : i32
    %c0_i32_1 = arith.constant 0 : i32
    return %arg0, %c0_i32, %c0_i32_0 : i32, i32, i32
  }
}

</mosaic_0001>

<llo_original>
// kernel: _giou_loss_impl.1
$region0: #{_giou_loss_impl.1}
  #allocation0 [shape = 'u32[]', space=smem, size = 0x4, offset = 0x4, fixed_abs, tag = 'smem constant byte address 0x4 - core index']
  #allocation1 [shape = 'u32[144,128]{1,0:T(1,128)}', space=vmem, size = 0x12000, scoped, tag = 'internal scratch']
  %s0 = inlined_call_operand.vmem [shape: f32[4,8,128], index: 0, kind: input, shape index: {}]
  %s1 = inlined_call_operand.vmem [shape: f32[4,8,128], index: 1, kind: input, shape index: {}]
  %s2 = inlined_call_operand.vmem [shape: f32[8,128], index: 2, kind: output, shape index: {0}]
  %s3 = inlined_call_operand.vmem [shape: f32[1,8,128], index: 3, kind: output, shape index: {1}]
  %4 = xla_tuple %s2, %s3
  %s5 = sld [smem:[#allocation0]]
  $region34: #{_giou_loss_impl.1} parent=0
    _
  %s7 = ssub.s32 1, %s5
  %s8 = scalar_select 0, %s7, %s5
  // Predicated region
  $region2: #{_giou_loss_impl.1} parent=0 // pred_check
    _
  $region3: #{_giou_loss_impl.1} parent=0 // pred_check_branch
    %10 = sbr.rel (0) target = $region5
  $region4: #{_giou_loss_impl.1} parent=0 // pred_region
    _
  $region5: #{_giou_loss_impl.1} parent=0 // pred_fallthru
    _
  // Predicated region
  $region6: #{_giou_loss_impl.1} parent=0 // pred_check
    _
  $region7: #{_giou_loss_impl.1} parent=0 // pred_check_branch
    %12 = sbr.rel (0) target = $region9
  $region8: #{_giou_loss_impl.1} parent=0 // pred_region
    _
  $region9: #{_giou_loss_impl.1} parent=0 // pred_fallthru
    _
  %v13 = vld [vmem:[%s0] sm:$0xff]
  %v14 = vld [vmem:[%s0 + $0x8] sm:$0xff]
  %v15 = vld [vmem:[%s0 + $0x10] sm:$0xff]
  %v16 = vld [vmem:[%s0 + $0x18] sm:$0xff]
  %v17 = vld [vmem:[%s1] sm:$0xff]
  %v18 = vld [vmem:[%s1 + $0x8] sm:$0xff]
  %v19 = vld [vmem:[%s1 + $0x10] sm:$0xff]
  %v20 = vld [vmem:[%s1 + $0x18] sm:$0xff]
  %v21 = vadd.f32 %v17, %v19
  %v22 = vadd.f32 %v18, %v20
  %v23 = vmul.f32 %v21, %v22
  %v24 = vadd.f32 %v13, %v15
  %v25 = vadd.f32 %v14, %v16
  %v26 = vmul.f32 %v24, %v25
  %v27 = vmin.f32 %v13, %v17
  %v28 = vmin.f32 %v15, %v19
  %v29 = vadd.f32 %v27, %v28
  %v30 = vmax.f32 %v13, %v17
  %v31 = vmax.f32 %v15, %v19
  %v32 = vadd.f32 %v30, %v31
  %v33 = vmin.f32 %v16, %v20
  %v34 = vmin.f32 %v14, %v18
  %v35 = vadd.f32 %v33, %v34
  %v36 = vmax.f32 %v16, %v20
  %v37 = vmax.f32 %v14, %v18
  %v38 = vadd.f32 %v36, %v37
  %v39 = vmul.f32 %v32, %v38
  %v40 = vadd.f32 %v39, 1e-07
  %v41 = vmul.f32 %v29, %v35
  %v42 = vadd.f32 %v23, %v26
  %v43 = vsub.f32 %v42, %v41
  %v44 = vadd.f32 %v43, 1e-07
  %v45 = vrcp.pop %v44
  %v46 = vmul.f32 %v44, %v45
  %v47 = vsub.f32 2.0, %v46
  %v48 = vmul.f32 %v45, %v47
  %v49 = vmul.f32 %v41, %v48
  %v50 = vsub.f32 1.0, %v49
  %v51 = vsub.f32 %v40, %v44
  %v52 = vrcp.pop %v40
  %v53 = vmul.f32 %v40, %v52
  %v54 = vsub.f32 2.0, %v53
  %v55 = vmul.f32 %v52, %v54
  %v56 = vmul.f32 %v51, %v55
  %v57 = vadd.f32 %v50, %v56
  %58 = vst [vmem:[%s2] sm:$0xff] %v49
  %p59 = scmp.eq.s32.totalorder 0, 0
  %p60 = scmp.ne.s32.totalorder 0, 0
  // Predicated region
  $region10: #{_giou_loss_impl.1} parent=0 // pred_check
    %p61 = pneg %p60
  $region11: #{_giou_loss_impl.1} parent=0 // pred_check_branch
    %63 = sbr.rel (%p61) target = $region13
  $region12: #{_giou_loss_impl.1} parent=0 // pred_region
    %v64 = vadd.f32 %v57, 0.0
    %65 = vst [vmem:[%s3] sm:$0xff] %v64
  $region13: #{_giou_loss_impl.1} parent=0 // pred_fallthru
    _
  // Predicated region
  $region14: #{_giou_loss_impl.1} parent=0 // pred_check
    %p66 = pneg %p59
  $region15: #{_giou_loss_impl.1} parent=0 // pred_check_branch
    %68 = sbr.rel (%p66) target = $region17
  $region16: #{_giou_loss_impl.1} parent=0 // pred_region
    %v69 = vlaneseq
    %v70 = vshrl.u32 %v69, 7
    %s71 = smul.u32 0, 8
    %v72 = vstv %s71
    %v73 = vadd.s32 %v70, %v72
    %v74 = vlaneseq
    %v75 = vand.u32 %v74, 127
    %vm76 = vcmp.lt.s32.totalorder %v73, 4
    %vm77 = vcmp.eq.s32.totalorder %v73, 4
    %vm78 = vcmp.lt.s32.totalorder %v75, 0
    %vm79 = vmand %vm77, %vm78
    %vm80 = vmor %vm76, %vm79
    %v81 = vsel %vm80, %v57, 0.0
    %v82 = vadd.f32 %v81, 0.0
    %83 = vst [vmem:[%s3] sm:$0xff] %v82
  $region17: #{_giou_loss_impl.1} parent=0 // pred_fallthru
    _
  // Predicated region
  $region18: #{_giou_loss_impl.1} parent=0 // pred_check
    _
  $region19: #{_giou_loss_impl.1} parent=0 // pred_check_branch
    %85 = sbr.rel (0) target = $region21
  $region20: #{_giou_loss_impl.1} parent=0 // pred_region
    _
  $region21: #{_giou_loss_impl.1} parent=0 // pred_fallthru
    _
  // Predicated region
  $region22: #{_giou_loss_impl.1} parent=0 // pred_check
    _
  $region23: #{_giou_loss_impl.1} parent=0 // pred_check_branch
    %87 = sbr.rel (0) target = $region25
  $region24: #{_giou_loss_impl.1} parent=0 // pred_region
    _
  $region25: #{_giou_loss_impl.1} parent=0 // pred_fallthru
    _
  // Predicated region
  $region26: #{_giou_loss_impl.1} parent=0 // pred_check
    _
  $region27: #{_giou_loss_impl.1} parent=0 // pred_check_branch
    %89 = sbr.rel (0) target = $region29
  $region28: #{_giou_loss_impl.1} parent=0 // pred_region
    _
  $region29: #{_giou_loss_impl.1} parent=0 // pred_fallthru
    _
  // Predicated region
  $region30: #{_giou_loss_impl.1} parent=0 // pred_check
    _
  $region31: #{_giou_loss_impl.1} parent=0 // pred_check_branch
    %91 = sbr.rel (0) target = $region33
  $region32: #{_giou_loss_impl.1} parent=0 // pred_region
    _
  $region33: #{_giou_loss_impl.1} parent=0 // pred_fallthru
    _

</llo_original>
